<compile_context>
chip_gen: v7x
topology: tpu7x:2x2x1
jax: 0.10.0
libtpu: 0.0.40
codegen_flags: <defaults>
</compile_context>

<pallas_src>
import functools

import numpy as np
import jax
import jax.numpy as jnp
from jax.experimental import pallas as pl
from jax.experimental.pallas import tpu as pltpu

LANE = 128
SUB = 32                      # sublane alignment safe for f32/bf16/int8 blocks
TILE_ELEMS = 4096 * 128       # ~2 MiB f32 per input per grid step (DMA tile)
CHUNK_ELEMS = 512 * 128       # ~256 KiB f32 per input per inner compute chunk
MAX_NATIVE_LANE = 2048        # widest native last dim we keep as the lane axis


def _round_up(x, m):
    return -(-x // m) * m


def _bce_dice_kernel(pr_ref, gt_ref, out_ref,
                     tp_acc, sp_acc, sg_acc, bce_acc,
                     *, rows_valid, chunk_r, any_mask):
    c = pl.program_id(0)            # core / parallel axis
    i = pl.program_id(1)            # reduction (row-block) axis
    bpc = pl.num_programs(1)
    tile_r, lane = pr_ref.shape
    n_chunks = tile_r // chunk_r
    nsub = chunk_r // 8

    @pl.when(i == 0)
    def _():
        tp_acc[...] = jnp.zeros_like(tp_acc)
        sp_acc[...] = jnp.zeros_like(sp_acc)
        sg_acc[...] = jnp.zeros_like(sg_acc)
        bce_acc[...] = jnp.zeros_like(bce_acc)

    g = c * bpc + i                 # global (unclamped) row-block index
    block_row0 = g * tile_r

    def fold(x):
        # (chunk_r, lane) -> (8, lane): vreg-granular reshape + pure VPU adds.
        return jnp.sum(x.reshape(nsub, 8, lane), axis=0)

    def accum_chunk(r0, masked):
        pr = pr_ref[pl.ds(r0, chunk_r), :].astype(jnp.float32)
        gt = gt_ref[pl.ds(r0, chunk_r), :].astype(jnp.float32)
        if masked:
            # Mask rows past the real array BEFORE the logs so OOB garbage can never
            # produce NaN/inf that survives; masked elements contribute exactly 0.
            row_ids = (block_row0 + r0
                       + jax.lax.broadcasted_iota(jnp.int32, (chunk_r, lane), 0))
            valid = row_ids < rows_valid
            pr = jnp.where(valid, pr, 0.0)
            gt = jnp.where(valid, gt, 0.0)
        # BCE per-element term; log clamped at -100 to match torch.nn.BCELoss.
        log_pr = jnp.maximum(jnp.log(pr), -100.0)
        log_1mpr = jnp.maximum(jnp.log(1.0 - pr), -100.0)
        bce_elem = -(gt * log_pr + (1.0 - gt) * log_1mpr)
        tp_acc[...] += fold(gt * pr)
        sp_acc[...] += fold(pr)
        sg_acc[...] += fold(gt)
        bce_acc[...] += fold(bce_elem)

    def accum_block(masked):
        if n_chunks == 1:
            accum_chunk(0, masked)
        else:
            @pl.loop(0, n_chunks)
            def _(s):
                accum_chunk(pl.multiple_of(s * chunk_r, chunk_r), masked)

    if any_mask:
        needs_mask = (g + 1) * tile_r > rows_valid   # only tail / overhang blocks

        @pl.when(jnp.logical_not(needs_mask))
        def _():
            accum_block(False)

        @pl.when(needs_mask)
        def _():
            accum_block(True)
    else:
        accum_block(False)

    @pl.when(i == bpc - 1)
    def _():
        # Per-core (8, lane) partial sums; cross-lane reduction + the (nonlinear)
        # dice/BCE formula run once in the tiny wrapper epilogue.
        out_ref[0, 0, :, :] = tp_acc[...]
        out_ref[0, 1, :, :] = sp_acc[...]
        out_ref[0, 2, :, :] = sg_acc[...]
        out_ref[0, 3, :, :] = bce_acc[...]


def bce_dice_loss(y_pr, y_gt, eps=1e-7, lambda_dice=1.0, lambda_bce=1.0,
                  tile_elems=TILE_ELEMS, chunk_elems=CHUNK_ELEMS):
    """Scalar BCE-Dice loss matching BCEDiceLoss.forward (dice + mean BCE)."""
    assert y_pr.shape == y_gt.shape
    shape = tuple(y_pr.shape)
    n_elem = int(np.prod(shape))
    assert n_elem > 0

    last = shape[-1]
    if (len(shape) >= 2 and last % LANE == 0 and last <= MAX_NATIVE_LANE
            and (n_elem // last) >= SUB):
        # Copy-free path: native last dim is already lane-aligned; collapsing the
        # leading dims does not touch the (8,128)-tiled layout of the trailing dims.
        lane = last
        rows = n_elem // lane
        pr2 = y_pr.reshape(rows, lane)
        gt2 = y_gt.reshape(rows, lane)
    else:
        # Fallback: ravel + pad into a (rows, 128) slab (copy; only non-aligned or
        # tiny inputs). Padded zeros contribute exactly 0 to every accumulated sum.
        lane = LANE
        rows = _round_up(n_elem, lane * SUB) // lane
        padded = rows * lane
        pr_flat = jnp.ravel(y_pr)
        gt_flat = jnp.ravel(y_gt)
        if padded > n_elem:
            pr_flat = jnp.concatenate(
                [pr_flat, jnp.zeros((padded - n_elem,), y_pr.dtype)])
            gt_flat = jnp.concatenate(
                [gt_flat, jnp.zeros((padded - n_elem,), y_gt.dtype)])
        pr2 = pr_flat.reshape(rows, lane)
        gt2 = gt_flat.reshape(rows, lane)

    # ---- tiling --------------------------------------------------------------
    chunk_r = max(SUB, min((chunk_elems // lane) // SUB * SUB, (rows // SUB) * SUB))
    n_chunks = max(1, min(tile_elems // (chunk_r * lane), rows // chunk_r))
    tile_r = chunk_r * n_chunks                     # <= rows, multiple of chunk_r
    row_blocks = -(-rows // tile_r)

    # Always split the reduction across both TensorCores when there is more than
    # one block; odd block counts get one clamped+masked overhang block on core 1.
    ncores = 2 if row_blocks >= 2 else 1
    bpc = -(-row_blocks // ncores)
    any_mask = (ncores * bpc * tile_r) > rows

    kernel = functools.partial(_bce_dice_kernel,
                               rows_valid=rows, chunk_r=chunk_r, any_mask=any_mask)

    def in_map(c, i):
        return (jnp.minimum(c * bpc + i, row_blocks - 1), 0)

    cost = pl.CostEstimate(
        flops=12 * n_elem,
        transcendentals=2 * n_elem,
        bytes_accessed=n_elem * (y_pr.dtype.itemsize + y_gt.dtype.itemsize)
        + ncores * 4 * 8 * lane * 4,
    )

    partials = pl.pallas_call(
        kernel,
        out_shape=jax.ShapeDtypeStruct((ncores, 4, 8, lane), jnp.float32),
        grid_spec=pltpu.PrefetchScalarGridSpec(
            num_scalar_prefetch=0,
            grid=(ncores, bpc),
            in_specs=[pl.BlockSpec((tile_r, lane), in_map),
                      pl.BlockSpec((tile_r, lane), in_map)],
            out_specs=pl.BlockSpec((1, 4, 8, lane), lambda c, i: (c, 0, 0, 0)),
            scratch_shapes=[pltpu.VMEM((8, lane), jnp.float32)] * 4,
        ),
        compiler_params=pltpu.CompilerParams(
            dimension_semantics=("parallel", "arbitrary")),
        cost_estimate=cost,
    )(pr2, gt2)

    # Tiny epilogue: reduce the (ncores, 4, 8, lane) slab, apply dice + BCE formula
    # (the dice ratio is nonlinear, so per-core partial sums combine outside).
    sums = jnp.sum(partials, axis=(0, 2, 3))
    tp, sp, sg, bce_sum = sums[0], sums[1], sums[2], sums[3]
    fp = sp - tp
    fn = sg - tp
    score = (2.0 * tp + eps) / (2.0 * tp + fn + fp + eps)
    dice = 1.0 - score
    bce = bce_sum / jnp.float32(n_elem)
    return lambda_dice * dice + lambda_bce * bce


def _reference_np(y_pr, y_gt, eps=1e-7, lambda_dice=1.0, lambda_bce=1.0):
    """float64 numpy reference matching BCEDiceLoss.forward."""
    pr = np.asarray(y_pr, dtype=np.float64).reshape(-1)
    gt = np.asarray(y_gt, dtype=np.float64).reshape(-1)
    tp = np.sum(gt * pr)
    fp = np.sum(pr) - tp
    fn = np.sum(gt) - tp
    score = (2.0 * tp + eps) / (2.0 * tp + fn + fp + eps)
    dice = 1.0 - score
    log_pr = np.maximum(np.log(pr), -100.0)
    log_1mpr = np.maximum(np.log(1.0 - pr), -100.0)
    bce = np.mean(-(gt * log_pr + (1.0 - gt) * log_1mpr))
    return lambda_dice * dice + lambda_bce * bce


if __name__ == "__main__":
    key = jax.random.PRNGKey(0)
    # (shape, tile_elems, chunk_elems): small shapes; overrides shrink the tiles so
    # the multi-block / 2-core / tail-mask / chunk-loop code paths are exercised.
    cases = [
        ((2, 4, 16, 16), TILE_ELEMS, CHUNK_ELEMS),     # primary NCHW case (pad path)
        ((2, 3, 5, 7), TILE_ELEMS, CHUNK_ELEMS),       # numel not a multiple of 128
        ((2, 4, 8, 128), TILE_ELEMS, CHUNK_ELEMS),     # copy-free native-lane path
        ((2, 4, 41, 128), 32 * 128, 32 * 128),         # 2 cores, odd blocks, tail mask
        ((2, 4, 128, 128), 512 * 128, 256 * 128),      # 2 cores + multi-chunk pl.loop
    ]
    result = None
    for shape, te, ce in cases:
        key, k1, k2 = jax.random.split(key, 3)
        y_pr = jax.nn.sigmoid(jax.random.normal(k1, shape, jnp.float32))
        y_gt = (jax.random.uniform(k2, shape) > 0.5).astype(jnp.float32)

        loss = jax.block_until_ready(
            bce_dice_loss(y_pr, y_gt, tile_elems=te, chunk_elems=ce))
        ref = _reference_np(np.asarray(y_pr), np.asarray(y_gt))

        loss_f = float(loss)
        assert np.isfinite(loss_f), (shape, loss_f)
        assert abs(loss_f - ref) <= 1e-5 * max(1.0, abs(ref)), (shape, loss_f, ref)
        result = loss

    print("KERNEL_OK")
</pallas_src>

<mosaic_0001>
module attributes {stable_mosaic.version = 11 : i64} {
  func.func @_bce_dice_kernel(%arg0: i32, %arg1: i32, %arg2: memref<32x128xf32, #tpu.memory_space<vmem>>, %arg3: memref<32x128xf32, #tpu.memory_space<vmem>>, %arg4: memref<1x4x8x128xf32, #tpu.memory_space<vmem>>, %arg5: memref<8x128xf32, #tpu.memory_space<vmem>>, %arg6: memref<8x128xf32, #tpu.memory_space<vmem>>, %arg7: memref<8x128xf32, #tpu.memory_space<vmem>>, %arg8: memref<8x128xf32, #tpu.memory_space<vmem>>) attributes {dimension_semantics = [#tpu.dimension_semantics<parallel>, #tpu.dimension_semantics<arbitrary>], iteration_bounds = array<i64: 1, 1>, scalar_prefetch = 0 : i64, scratch_operands = 4 : i64, tpu.core_type = #tpu.core_type<tc>, window_params = [{transform_indices = @transform_0, window_bounds = array<i64: 32, 128>}, {transform_indices = @transform_1, window_bounds = array<i64: 32, 128>}, {transform_indices = @transform_2, window_bounds = array<i64: 1, 4, 8, 128>}]} {
    %c0_i32 = arith.constant 0 : i32
    %0 = arith.cmpi eq, %arg1, %c0_i32 : i32
    %1 = arith.extui %0 : i1 to i32
    %c0_i32_0 = arith.constant 0 : i32
    %2 = arith.cmpi ne, %1, %c0_i32_0 : i32
    scf.if %2 {
      %cst_30 = arith.constant 0.000000e+00 : f32
      %44 = vector.broadcast %cst_30 : f32 to vector<8x128xf32>
      %c0_31 = arith.constant 0 : index
      %c0_32 = arith.constant 0 : index
      %45 = vector.load %arg5[%c0_31, %c0_32] : memref<8x128xf32, #tpu.memory_space<vmem>>, vector<8x128xf32>
      tpu.vector_store %arg5[%c0_31, %c0_32], %44 {strides = array<i32>} : memref<8x128xf32, #tpu.memory_space<vmem>>, vector<8x128xf32>,
      %cst_33 = arith.constant 0.000000e+00 : f32
      %46 = vector.broadcast %cst_33 : f32 to vector<8x128xf32>
      %c0_34 = arith.constant 0 : index
      %c0_35 = arith.constant 0 : index
      %47 = vector.load %arg6[%c0_34, %c0_35] : memref<8x128xf32, #tpu.memory_space<vmem>>, vector<8x128xf32>
      tpu.vector_store %arg6[%c0_34, %c0_35], %46 {strides = array<i32>} : memref<8x128xf32, #tpu.memory_space<vmem>>, vector<8x128xf32>,
      %cst_36 = arith.constant 0.000000e+00 : f32
      %48 = vector.broadcast %cst_36 : f32 to vector<8x128xf32>
      %c0_37 = arith.constant 0 : index
      %c0_38 = arith.constant 0 : index
      %49 = vector.load %arg7[%c0_37, %c0_38] : memref<8x128xf32, #tpu.memory_space<vmem>>, vector<8x128xf32>
      tpu.vector_store %arg7[%c0_37, %c0_38], %48 {strides = array<i32>} : memref<8x128xf32, #tpu.memory_space<vmem>>, vector<8x128xf32>,
      %cst_39 = arith.constant 0.000000e+00 : f32
      %50 = vector.broadcast %cst_39 : f32 to vector<8x128xf32>
      %c0_40 = arith.constant 0 : index
      %c0_41 = arith.constant 0 : index
      %51 = vector.load %arg8[%c0_40, %c0_41] : memref<8x128xf32, #tpu.memory_space<vmem>>, vector<8x128xf32>
      tpu.vector_store %arg8[%c0_40, %c0_41], %50 {strides = array<i32>} : memref<8x128xf32, #tpu.memory_space<vmem>>, vector<8x128xf32>,
    } else {
    }
    %c0 = arith.constant 0 : index
    %c0_1 = arith.constant 0 : index
    %3 = vector.load %arg2[%c0, %c0_1] : memref<32x128xf32, #tpu.memory_space<vmem>>, vector<32x128xf32>
    %c0_2 = arith.constant 0 : index
    %c0_3 = arith.constant 0 : index
    %4 = vector.load %arg3[%c0_2, %c0_3] : memref<32x128xf32, #tpu.memory_space<vmem>>, vector<32x128xf32>
    %5 = math.log %3 : vector<32x128xf32>
    %cst = arith.constant -1.000000e+02 : f32
    %6 = vector.broadcast %cst : f32 to vector<32x128xf32>
    %7 = arith.maximumf %5, %6 : vector<32x128xf32>
    %cst_4 = arith.constant 1.000000e+00 : f32
    %8 = vector.broadcast %cst_4 : f32 to vector<32x128xf32>
    %9 = arith.subf %8, %3 : vector<32x128xf32>
    %10 = math.log %9 : vector<32x128xf32>
    %cst_5 = arith.constant -1.000000e+02 : f32
    %11 = vector.broadcast %cst_5 : f32 to vector<32x128xf32>
    %12 = arith.maximumf %10, %11 : vector<32x128xf32>
    %13 = arith.mulf %4, %7 : vector<32x128xf32>
    %cst_6 = arith.constant 1.000000e+00 : f32
    %14 = vector.broadcast %cst_6 : f32 to vector<32x128xf32>
    %15 = arith.subf %14, %4 : vector<32x128xf32>
    %16 = arith.mulf %15, %12 : vector<32x128xf32>
    %17 = arith.addf %13, %16 : vector<32x128xf32>
    %cst_7 = arith.constant 0.000000e+00 : f32
    %18 = vector.broadcast %cst_7 : f32 to vector<32x128xf32>
    %19 = arith.subf %18, %17 : vector<32x128xf32>
    %c0_8 = arith.constant 0 : index
    %c0_9 = arith.constant 0 : index
    %20 = vector.load %arg5[%c0_8, %c0_9] : memref<8x128xf32, #tpu.memory_space<vmem>>, vector<8x128xf32>
    %21 = arith.mulf %4, %3 : vector<32x128xf32>
    %22 = vector.shape_cast %21 : vector<32x128xf32> to vector<4x8x128xf32>
    %cst_10 = arith.constant dense<0.000000e+00> : vector<8x128xf32>
    %23 = vector.multi_reduction <add>, %22, %cst_10 [0] : vector<4x8x128xf32> to vector<8x128xf32>
    %24 = arith.addf %20, %23 : vector<8x128xf32>
    %c0_11 = arith.constant 0 : index
    %c0_12 = arith.constant 0 : index
    %25 = vector.load %arg5[%c0_11, %c0_12] : memref<8x128xf32, #tpu.memory_space<vmem>>, vector<8x128xf32>
    tpu.vector_store %arg5[%c0_11, %c0_12], %24 {strides = array<i32>} : memref<8x128xf32, #tpu.memory_space<vmem>>, vector<8x128xf32>,
    %c0_13 = arith.constant 0 : index
    %c0_14 = arith.constant 0 : index
    %26 = vector.load %arg6[%c0_13, %c0_14] : memref<8x128xf32, #tpu.memory_space<vmem>>, vector<8x128xf32>
    %27 = vector.shape_cast %3 : vector<32x128xf32> to vector<4x8x128xf32>
    %cst_15 = arith.constant dense<0.000000e+00> : vector<8x128xf32>
    %28 = vector.multi_reduction <add>, %27, %cst_15 [0] : vector<4x8x128xf32> to vector<8x128xf32>
    %29 = arith.addf %26, %28 : vector<8x128xf32>
    %c0_16 = arith.constant 0 : index
    %c0_17 = arith.constant 0 : index
    %30 = vector.load %arg6[%c0_16, %c0_17] : memref<8x128xf32, #tpu.memory_space<vmem>>, vector<8x128xf32>
    tpu.vector_store %arg6[%c0_16, %c0_17], %29 {strides = array<i32>} : memref<8x128xf32, #tpu.memory_space<vmem>>, vector<8x128xf32>,
    %c0_18 = arith.constant 0 : index
    %c0_19 = arith.constant 0 : index
    %31 = vector.load %arg7[%c0_18, %c0_19] : memref<8x128xf32, #tpu.memory_space<vmem>>, vector<8x128xf32>
    %32 = vector.shape_cast %4 : vector<32x128xf32> to vector<4x8x128xf32>
    %cst_20 = arith.constant dense<0.000000e+00> : vector<8x128xf32>
    %33 = vector.multi_reduction <add>, %32, %cst_20 [0] : vector<4x8x128xf32> to vector<8x128xf32>
    %34 = arith.addf %31, %33 : vector<8x128xf32>
    %c0_21 = arith.constant 0 : index
    %c0_22 = arith.constant 0 : index
    %35 = vector.load %arg7[%c0_21, %c0_22] : memref<8x128xf32, #tpu.memory_space<vmem>>, vector<8x128xf32>
    tpu.vector_store %arg7[%c0_21, %c0_22], %34 {strides = array<i32>} : memref<8x128xf32, #tpu.memory_space<vmem>>, vector<8x128xf32>,
    %c0_23 = arith.constant 0 : index
    %c0_24 = arith.constant 0 : index
    %36 = vector.load %arg8[%c0_23, %c0_24] : memref<8x128xf32, #tpu.memory_space<vmem>>, vector<8x128xf32>
    %37 = vector.shape_cast %19 : vector<32x128xf32> to vector<4x8x128xf32>
    %cst_25 = arith.constant dense<0.000000e+00> : vector<8x128xf32>
    %38 = vector.multi_reduction <add>, %37, %cst_25 [0] : vector<4x8x128xf32> to vector<8x128xf32>
    %39 = arith.addf %36, %38 : vector<8x128xf32>
    %c0_26 = arith.constant 0 : index
    %c0_27 = arith.constant 0 : index
    %40 = vector.load %arg8[%c0_26, %c0_27] : memref<8x128xf32, #tpu.memory_space<vmem>>, vector<8x128xf32>
    tpu.vector_store %arg8[%c0_26, %c0_27], %39 {strides = array<i32>} : memref<8x128xf32, #tpu.memory_space<vmem>>, vector<8x128xf32>,
    %c0_i32_28 = arith.constant 0 : i32
    %41 = arith.cmpi eq, %arg1, %c0_i32_28 : i32
    %42 = arith.extui %41 : i1 to i32
    %c0_i32_29 = arith.constant 0 : i32
    %43 = arith.cmpi ne, %42, %c0_i32_29 : i32
    scf.if %43 {
      %c0_30 = arith.constant 0 : index
      %c0_31 = arith.constant 0 : index
      %44 = vector.load %arg5[%c0_30, %c0_31] : memref<8x128xf32, #tpu.memory_space<vmem>>, vector<8x128xf32>
      %c0_32 = arith.constant 0 : index
      %c0_33 = arith.constant 0 : index
      %c0_34 = arith.constant 0 : index
      %c0_35 = arith.constant 0 : index
      %45 = vector.load %arg4[%c0_32, %c0_33, %c0_34, %c0_35] : memref<1x4x8x128xf32, #tpu.memory_space<vmem>>, vector<1x1x8x128xf32>
      %46 = vector.shape_cast %45 : vector<1x1x8x128xf32> to vector<8x128xf32>
      %47 = vector.shape_cast %44 : vector<8x128xf32> to vector<1x1x8x128xf32>
      tpu.vector_store %arg4[%c0_32, %c0_33, %c0_34, %c0_35], %47 {strides = array<i32>} : memref<1x4x8x128xf32, #tpu.memory_space<vmem>>, vector<1x1x8x128xf32>,
      %c0_36 = arith.constant 0 : index
      %c0_37 = arith.constant 0 : index
      %48 = vector.load %arg6[%c0_36, %c0_37] : memref<8x128xf32, #tpu.memory_space<vmem>>, vector<8x128xf32>
      %c0_38 = arith.constant 0 : index
      %c1 = arith.constant 1 : index
      %c0_39 = arith.constant 0 : index
      %c0_40 = arith.constant 0 : index
      %49 = vector.load %arg4[%c0_38, %c1, %c0_39, %c0_40] : memref<1x4x8x128xf32, #tpu.memory_space<vmem>>, vector<1x1x8x128xf32>
      %50 = vector.shape_cast %49 : vector<1x1x8x128xf32> to vector<8x128xf32>
      %51 = vector.shape_cast %48 : vector<8x128xf32> to vector<1x1x8x128xf32>
      tpu.vector_store %arg4[%c0_38, %c1, %c0_39, %c0_40], %51 {strides = array<i32>} : memref<1x4x8x128xf32, #tpu.memory_space<vmem>>, vector<1x1x8x128xf32>,
      %c0_41 = arith.constant 0 : index
      %c0_42 = arith.constant 0 : index
      %52 = vector.load %arg7[%c0_41, %c0_42] : memref<8x128xf32, #tpu.memory_space<vmem>>, vector<8x128xf32>
      %c0_43 = arith.constant 0 : index
      %c2 = arith.constant 2 : index
      %c0_44 = arith.constant 0 : index
      %c0_45 = arith.constant 0 : index
      %53 = vector.load %arg4[%c0_43, %c2, %c0_44, %c0_45] : memref<1x4x8x128xf32, #tpu.memory_space<vmem>>, vector<1x1x8x128xf32>
      %54 = vector.shape_cast %53 : vector<1x1x8x128xf32> to vector<8x128xf32>
      %55 = vector.shape_cast %52 : vector<8x128xf32> to vector<1x1x8x128xf32>
      tpu.vector_store %arg4[%c0_43, %c2, %c0_44, %c0_45], %55 {strides = array<i32>} : memref<1x4x8x128xf32, #tpu.memory_space<vmem>>, vector<1x1x8x128xf32>,
      %c0_46 = arith.constant 0 : index
      %c0_47 = arith.constant 0 : index
      %56 = vector.load %arg8[%c0_46, %c0_47] : memref<8x128xf32, #tpu.memory_space<vmem>>, vector<8x128xf32>
      %c0_48 = arith.constant 0 : index
      %c3 = arith.constant 3 : index
      %c0_49 = arith.constant 0 : index
      %c0_50 = arith.constant 0 : index
      %57 = vector.load %arg4[%c0_48, %c3, %c0_49, %c0_50] : memref<1x4x8x128xf32, #tpu.memory_space<vmem>>, vector<1x1x8x128xf32>
      %58 = vector.shape_cast %57 : vector<1x1x8x128xf32> to vector<8x128xf32>
      %59 = vector.shape_cast %56 : vector<8x128xf32> to vector<1x1x8x128xf32>
      tpu.vector_store %arg4[%c0_48, %c3, %c0_49, %c0_50], %59 {strides = array<i32>} : memref<1x4x8x128xf32, #tpu.memory_space<vmem>>, vector<1x1x8x128xf32>,
    } else {
    }
    return
  }
  func.func @transform_0(%arg0: i32, %arg1: i32) -> (i32, i32) {
    %c1_i32 = arith.constant 1 : i32
    %0 = arith.muli %arg0, %c1_i32 : i32
    %1 = arith.addi %0, %arg1 : i32
    %c0_i32 = arith.constant 0 : i32
    %2 = arith.minsi %1, %c0_i32 : i32
    %c0_i32_0 = arith.constant 0 : i32
    %c0_i32_1 = arith.constant 0 : i32
    return %2, %c0_i32_0 : i32, i32
  }
  func.func @transform_1(%arg0: i32, %arg1: i32) -> (i32, i32) {
    %c1_i32 = arith.constant 1 : i32
    %0 = arith.muli %arg0, %c1_i32 : i32
    %1 = arith.addi %0, %arg1 : i32
    %c0_i32 = arith.constant 0 : i32
    %2 = arith.minsi %1, %c0_i32 : i32
    %c0_i32_0 = arith.constant 0 : i32
    %c0_i32_1 = arith.constant 0 : i32
    return %2, %c0_i32_0 : i32, i32
  }
  func.func @transform_2(%arg0: i32, %arg1: i32) -> (i32, i32, i32, i32) {
    %c0_i32 = arith.constant 0 : i32
    %c0_i32_0 = arith.constant 0 : i32
    %c0_i32_1 = arith.constant 0 : i32
    %c0_i32_2 = arith.constant 0 : i32
    return %arg0, %c0_i32, %c0_i32_0, %c0_i32_1 : i32, i32, i32, i32
  }
}

</mosaic_0001>

<llo_original>
// kernel: tpu_custom_call.1
$region0: #{tpu_custom_call.1}
  #allocation0 [shape = 'u32[]', space=smem, size = 0x4, offset = 0x4, fixed_abs, tag = 'smem constant byte address 0x4 - core index']
  #allocation1 [shape = 'u32[144,128]{1,0:T(1,128)}', space=vmem, size = 0x12000, scoped, tag = 'internal scratch']
  #allocation2 [shape = 'f32[8,128]{1,0:T(8,128)}', space=vmem, size = 0x1000, scoped, tag = 'scratch operand']
  #allocation3 [shape = 'f32[8,128]{1,0:T(8,128)}', space=vmem, size = 0x1000, scoped, tag = 'scratch operand']
  #allocation4 [shape = 'f32[8,128]{1,0:T(8,128)}', space=vmem, size = 0x1000, scoped, tag = 'scratch operand']
  #allocation5 [shape = 'f32[8,128]{1,0:T(8,128)}', space=vmem, size = 0x1000, scoped, tag = 'scratch operand']
  %s0 = inlined_call_operand.hbm [shape: f32[32,128], index: 0, kind: input, shape index: {}]
  %s1 = inlined_call_operand.hbm [shape: f32[32,128], index: 1, kind: input, shape index: {}]
  %s2 = inlined_call_operand.hbm [shape: f32[1,4,8,128], index: 2, kind: output, shape index: {}]
  %s3 = sld [smem:[#allocation0]]
  $region34: #{tpu_custom_call.1} parent=0
    _
  %s5 = ssub.s32 1, %s3
  %s6 = scalar_select 0, %s5, %s3
  $region1: #{tpu_custom_call.1} parent=0
    #allocation6 [shape = 'u8[16384]{0}', space=vmem, size = 0x4000, scoped, tag = 'input window, operand 0, single buffered']
    #allocation7 [shape = 's32[1]{0}', space=sflag, size = 0x4, scoped, tag = 'scoped memory for tpu_custom_call.1']
    #allocation8 [shape = 's32[1]{0}', space=sflag, size = 0x4, scoped, tag = 'scoped memory for tpu_custom_call.1']
    #allocation9 [shape = 'u8[16384]{0}', space=vmem, size = 0x4000, scoped, tag = 'input window, operand 1, single buffered']
    #allocation10 [shape = 's32[1]{0}', space=sflag, size = 0x4, scoped, tag = 'scoped memory for tpu_custom_call.1']
    #allocation11 [shape = 'u8[16384]{0}', space=vmem, size = 0x4000, scoped, tag = 'output window, operand 0, single buffered']
    %7 = vsyncpa [#allocation7], 0
    %8 = vsyncpa [#allocation10], 0
    %9 = vsyncpa [#allocation8], 0
    // Predicated region
    $region2: #{tpu_custom_call.1} parent=1 // pred_check
      _
    $region3: #{tpu_custom_call.1} parent=1 // pred_check_branch
      %11 = sbr.rel (0) target = $region5
    $region4: #{tpu_custom_call.1} parent=1 // pred_region
      %s12 = sadd.s32 0, 0
      %p13 = scmp.lt.s32.totalorder %s12, 0
      %s14 = scalar_select %p13, %s12, 0
      %s15 = smul.u32 4, %s14
      %s17 = ssub.s32 512, 512
      %18 = vsyncadd [#allocation7], %s17
      %s19 = smul.addr %s15, 128
      %s20 = scalar_lea.hbm %s0, %s19
      %s21 = sshll.u32 [#allocation6], 4
      %s22 = int_to_ptr.vmem [resolvable:$true] %s21
      %27 = dma.hbm_to_vmem [thread:$0]  %s20, 512, %s22, [#allocation7], 128, 128, 8
    $region5: #{tpu_custom_call.1} parent=1 // pred_fallthru
      _
    // Predicated region
    $region6: #{tpu_custom_call.1} parent=1 // pred_check
      _
    $region7: #{tpu_custom_call.1} parent=1 // pred_check_branch
      %29 = sbr.rel (0) target = $region9
    $region8: #{tpu_custom_call.1} parent=1 // pred_region
      %s30 = sadd.s32 0, 0
      %p31 = scmp.lt.s32.totalorder %s30, 0
      %s32 = scalar_select %p31, %s30, 0
      %s33 = smul.u32 4, %s32
      %s35 = ssub.s32 512, 512
      %36 = vsyncadd [#allocation10], %s35
      %s37 = smul.addr %s33, 128
      %s38 = scalar_lea.hbm %s1, %s37
      %s39 = sshll.u32 [#allocation9], 4
      %s40 = int_to_ptr.vmem [resolvable:$true] %s39
      %45 = dma.hbm_to_vmem [thread:$0]  %s38, 512, %s40, [#allocation10], 128, 128, 8
    $region9: #{tpu_custom_call.1} parent=1 // pred_fallthru
      _
    // Predicated region
    $region10: #{tpu_custom_call.1} parent=1 // pred_check
      _
    $region11: #{tpu_custom_call.1} parent=1 // pred_check_branch
      %47 = sbr.rel (0) target = $region13
    $region12: #{tpu_custom_call.1} parent=1 // pred_region
      %48 = dma.done [#allocation7], 512
    $region13: #{tpu_custom_call.1} parent=1 // pred_fallthru
      _
    // Predicated region
    $region14: #{tpu_custom_call.1} parent=1 // pred_check
      _
    $region15: #{tpu_custom_call.1} parent=1 // pred_check_branch
      %50 = sbr.rel (0) target = $region17
    $region16: #{tpu_custom_call.1} parent=1 // pred_region
      %51 = dma.done [#allocation10], 512
    $region17: #{tpu_custom_call.1} parent=1 // pred_fallthru
      _
    %s52 = sadd.s32 0, 0
    %p53 = scmp.lt.s32.totalorder %s52, 0
    %s54 = scalar_select %p53, %s52, 0
    %s55 = smul.u32 4, %s54
    %s56 = sadd.s32 0, 0
    %p57 = scmp.lt.s32.totalorder %s56, 0
    %s58 = scalar_select %p57, %s56, 0
    %s59 = smul.u32 4, %s58
    %p60 = scmp.eq.s32.totalorder 0, 0
    // Predicated region
    $region18: #{tpu_custom_call.1} parent=1 // pred_check
      %p61 = pneg %p60
    $region19: #{tpu_custom_call.1} parent=1 // pred_check_branch
      %63 = sbr.rel (%p61) target = $region21
    $region20: #{tpu_custom_call.1} parent=1 // pred_region
      %64 = vst [vmem:[#allocation2] sm:$0xff] 0.0
      %65 = vst [vmem:[#allocation3] sm:$0xff] 0.0
      %66 = vst [vmem:[#allocation4] sm:$0xff] 0.0
      %67 = vst [vmem:[#allocation5] sm:$0xff] 0.0
    $region21: #{tpu_custom_call.1} parent=1 // pred_fallthru
      _
    %v68 = vld [vmem:[#allocation6] sm:$0xff]
    %v69 = vld [vmem:[#allocation6 + $0x8] sm:$0xff]
    %v70 = vld [vmem:[#allocation6 + $0x10] sm:$0xff]
    %v71 = vld [vmem:[#allocation6 + $0x18] sm:$0xff]
    %v72 = vld [vmem:[#allocation9] sm:$0xff]
    %v73 = vld [vmem:[#allocation9 + $0x8] sm:$0xff]
    %v74 = vld [vmem:[#allocation9 + $0x10] sm:$0xff]
    %v75 = vld [vmem:[#allocation9 + $0x18] sm:$0xff]
    %v76 = vlog2.pop %v68
    %v77 = vmul.f32 %v76, 0.6931472
    %v78 = vlog2.pop %v69
    %v79 = vmul.f32 %v78, 0.6931472
    %v80 = vlog2.pop %v70
    %v81 = vmul.f32 %v80, 0.6931472
    %v82 = vlog2.pop %v71
    %v83 = vmul.f32 %v82, 0.6931472
    %v84 = vmax.f32 %v77, -100.0
    %v85 = vmax.f32 %v79, -100.0
    %v86 = vmax.f32 %v81, -100.0
    %v87 = vmax.f32 %v83, -100.0
    %v88 = vsub.f32 1.0, %v68
    %v89 = vsub.f32 1.0, %v69
    %v90 = vsub.f32 1.0, %v70
    %v91 = vsub.f32 1.0, %v71
    %v92 = vlog2.pop %v88
    %v93 = vmul.f32 %v92, 0.6931472
    %v94 = vlog2.pop %v89
    %v95 = vmul.f32 %v94, 0.6931472
    %v96 = vlog2.pop %v90
    %v97 = vmul.f32 %v96, 0.6931472
    %v98 = vlog2.pop %v91
    %v99 = vmul.f32 %v98, 0.6931472
    %v100 = vmax.f32 %v93, -100.0
    %v101 = vmax.f32 %v95, -100.0
    %v102 = vmax.f32 %v97, -100.0
    %v103 = vmax.f32 %v99, -100.0
    %v104 = vmul.f32 %v72, %v84
    %v105 = vmul.f32 %v73, %v85
    %v106 = vmul.f32 %v74, %v86
    %v107 = vmul.f32 %v75, %v87
    %v108 = vsub.f32 1.0, %v72
    %v109 = vsub.f32 1.0, %v73
    %v110 = vsub.f32 1.0, %v74
    %v111 = vsub.f32 1.0, %v75
    %v112 = vmul.f32 %v108, %v100
    %v113 = vmul.f32 %v109, %v101
    %v114 = vmul.f32 %v110, %v102
    %v115 = vmul.f32 %v111, %v103
    %v116 = vadd.f32 %v104, %v112
    %v117 = vadd.f32 %v105, %v113
    %v118 = vadd.f32 %v106, %v114
    %v119 = vadd.f32 %v107, %v115
    %v120 = vsub.f32 0.0, %v116
    %v121 = vsub.f32 0.0, %v117
    %v122 = vsub.f32 0.0, %v118
    %v123 = vsub.f32 0.0, %v119
    %v124 = vld [vmem:[#allocation2] sm:$0xff]
    %v125 = vmul.f32 %v72, %v68
    %v126 = vmul.f32 %v73, %v69
    %v127 = vmul.f32 %v74, %v70
    %v128 = vmul.f32 %v75, %v71
    %v129 = vadd.f32 %v125, %v126
    %v130 = vadd.f32 %v129, %v127
    %v131 = vadd.f32 %v130, %v128
    %v132 = vadd.f32 %v124, %v131
    %133 = vst [vmem:[#allocation2] sm:$0xff] %v132
    %v134 = vld [vmem:[#allocation3] sm:$0xff]
    %v135 = vadd.f32 %v68, %v69
    %v136 = vadd.f32 %v135, %v70
    %v137 = vadd.f32 %v136, %v71
    %v138 = vadd.f32 %v134, %v137
    %139 = vst [vmem:[#allocation3] sm:$0xff] %v138
    %v140 = vld [vmem:[#allocation4] sm:$0xff]
    %v141 = vadd.f32 %v72, %v73
    %v142 = vadd.f32 %v141, %v74
    %v143 = vadd.f32 %v142, %v75
    %v144 = vadd.f32 %v140, %v143
    %145 = vst [vmem:[#allocation4] sm:$0xff] %v144
    %v146 = vld [vmem:[#allocation5] sm:$0xff]
    %v147 = vadd.f32 %v120, %v121
    %v148 = vadd.f32 %v147, %v122
    %v149 = vadd.f32 %v148, %v123
    %v150 = vadd.f32 %v146, %v149
    %151 = vst [vmem:[#allocation5] sm:$0xff] %v150
    // Predicated region
    $region22: #{tpu_custom_call.1} parent=1 // pred_check
      %p152 = pneg %p60
    $region23: #{tpu_custom_call.1} parent=1 // pred_check_branch
      %154 = sbr.rel (%p152) target = $region25
    $region24: #{tpu_custom_call.1} parent=1 // pred_region
      %v155 = vld [vmem:[#allocation2] sm:$0xff]
      %156 = vst [vmem:[#allocation11] sm:$0xff] %v155
      %v157 = vld [vmem:[#allocation3] sm:$0xff]
      %s158 = scalar_lea.vmem [#allocation11], 8
      %159 = vst [vmem:[%s158] sm:$0xff] %v157
      %v160 = vld [vmem:[#allocation4] sm:$0xff]
      %s161 = scalar_lea.vmem [#allocation11], 16
      %162 = vst [vmem:[%s161] sm:$0xff] %v160
      %v163 = vld [vmem:[#allocation5] sm:$0xff]
      %s164 = scalar_lea.vmem [#allocation11], 24
      %165 = vst [vmem:[%s164] sm:$0xff] %v163
    $region25: #{tpu_custom_call.1} parent=1 // pred_fallthru
      _
    // Predicated region
    $region26: #{tpu_custom_call.1} parent=1 // pred_check
      _
    $region27: #{tpu_custom_call.1} parent=1 // pred_check_branch
      %167 = sbr.rel (0) target = $region29
    $region28: #{tpu_custom_call.1} parent=1 // pred_region
      %s169 = ssub.s32 512, 512
      %170 = vsyncadd [#allocation8], %s169
      %s171 = sshll.u32 [#allocation11], 4
      %s172 = int_to_ptr.vmem [resolvable:$true] %s171
      %177 = dma.vmem_to_hbm [thread:$0]  %s172, 512, %s2, [#allocation8], 128, 128, 8
    $region29: #{tpu_custom_call.1} parent=1 // pred_fallthru
      _
    // Predicated region
    $region30: #{tpu_custom_call.1} parent=1 // pred_check
      _
    $region31: #{tpu_custom_call.1} parent=1 // pred_check_branch
      %179 = sbr.rel (0) target = $region33
    $region32: #{tpu_custom_call.1} parent=1 // pred_region
      %180 = dma.done [#allocation8], 512
    $region33: #{tpu_custom_call.1} parent=1 // pred_fallthru
      _
    %181 = vsyncpa [#allocation7], 1
    %182 = vsyncpa [#allocation10], 1
    %183 = vsyncpa [#allocation8], 1

</llo_original>
